<compile_context>
chip_gen: v6e
topology: v6e:2x2x1
jax: 0.10.0
libtpu: 0.0.40
codegen_flags: <defaults>
</compile_context>

<pallas_src>
import jax
import jax.numpy as jnp
from jax.experimental import pallas as pl
from jax.experimental.pallas import tpu as pltpu

_LN_EPS = 1e-5
_TARGET_TOKENS = 1024                    # tokens per grid step (512-1024 sweet spot)
_TILE_VMEM_BUDGET = 28 * 1024 * 1024     # budget for double-buffered in+out tiles
_VMEM_LIMIT = 48 * 1024 * 1024           # explicit scoped-VMEM limit (v5e/v6e/v7x safe)


# --------------------------------------------------------------------------- #
# kernels
# --------------------------------------------------------------------------- #
def _pm_kernel_pairs(xe_ref, xo_ref, we_ref, wo_ref, b_ref, o_ref):
    """LayerNorm(4C) + Linear(4C -> 2C, bias-free) over 2x2-merged patches.

    xe_ref: (TP, TW2, 2C)   even input rows; features ordered [x0 | x2]
    xo_ref: (TP, TW2, 2C)   odd  input rows; features ordered [x1 | x3]
    we_ref: (2C, 2Cout)     gamma-fused weight rows for the even-row features
    wo_ref: (2C, 2Cout)     gamma-fused weight rows for the odd-row features
    b_ref : (1, 2Cout)      beta folded through the reduction weight (f32)
    o_ref : (TP, TW2, 2Cout)
    """
    tp, tw2, c2 = xe_ref.shape
    n_tok = tp * tw2
    inv_nf = 1.0 / (2 * c2)                       # 1 / (4*C)

    # f32 statistics; the (TP, TW2) -> (TP*TW2) merge is layout-trivial because
    # the wrapper guarantees TW2 is a multiple of 8.
    even = xe_ref[...].astype(jnp.float32).reshape(n_tok, c2)
    odd = xo_ref[...].astype(jnp.float32).reshape(n_tok, c2)

    # single-pass mean / variance over all 4C features
    s = jnp.sum(even, axis=-1, keepdims=True) + jnp.sum(odd, axis=-1, keepdims=True)
    ss = (jnp.sum(even * even, axis=-1, keepdims=True)
          + jnp.sum(odd * odd, axis=-1, keepdims=True))
    mean = s * inv_nf
    var = ss * inv_nf - mean * mean
    rstd = jax.lax.rsqrt(var + _LN_EPS)

    # normalized activations in the weights' (native) dtype -> MXU matmul
    xe = ((even - mean) * rstd).astype(we_ref.dtype)
    xo = ((odd - mean) * rstd).astype(wo_ref.dtype)

    acc = jnp.dot(xe, we_ref[...], preferred_element_type=jnp.float32)
    acc = acc + jnp.dot(xo, wo_ref[...], preferred_element_type=jnp.float32)
    acc = acc + b_ref[...]
    o_ref[...] = acc.reshape(tp, tw2, -1).astype(o_ref.dtype)


def _pm_kernel_flat(x_ref, w_ref, b_ref, o_ref):
    """Fallback kernel: tokens already merged to (TM, 4C) in the wrapper."""
    x = x_ref[...].astype(jnp.float32)
    inv_nf = 1.0 / x.shape[-1]
    s = jnp.sum(x, axis=-1, keepdims=True)
    ss = jnp.sum(x * x, axis=-1, keepdims=True)
    mean = s * inv_nf
    var = ss * inv_nf - mean * mean
    rstd = jax.lax.rsqrt(var + _LN_EPS)
    xn = ((x - mean) * rstd).astype(w_ref.dtype)
    acc = jnp.dot(xn, w_ref[...], preferred_element_type=jnp.float32) + b_ref[...]
    o_ref[...] = acc.astype(o_ref.dtype)


# --------------------------------------------------------------------------- #
# wrapper helpers
# --------------------------------------------------------------------------- #
def _fold_params(w_reduction, gamma, beta, compute_dtype):
    """Fold LayerNorm affine into the (4C, 2Cout) weight and a (1, 2Cout) bias."""
    w_t = jnp.transpose(w_reduction).astype(jnp.float32)      # (4C, 2Cout)  (x @ W^T)
    g = gamma.astype(jnp.float32)
    b = beta.astype(jnp.float32)
    w_fused = (g[:, None] * w_t).astype(compute_dtype)         # (4C, 2Cout)
    bias = (b[None, :] @ w_t).astype(jnp.float32)               # (1, 2Cout)
    return w_fused, bias


def _w_tile(w2):
    """Column-pair tile: multiple of 8 (trivial in-kernel merge + (8,128) rule)."""
    if w2 % 8 == 0:
        return w2
    best, best_cover = 8, 8 * pl.cdiv(w2, 8)
    for k in range(2, w2 // 8 + 1):
        cover = 8 * k * pl.cdiv(w2, 8 * k)
        if cover <= best_cover:
            best, best_cover = 8 * k, cover
    return best


def _pairs_per_block(n_pairs, tw2, n_w_blocks, c4, c2out, in_bytes, out_bytes):
    """Row-pairs per grid step: ~_TARGET_TOKENS tokens, double-buffered in budget."""
    per_pair = tw2 * (c4 * in_bytes + c2out * out_bytes)
    tp = max(1, min(_TILE_VMEM_BUDGET // (2 * per_pair),
                    max(1, _TARGET_TOKENS // tw2)))
    tp = min(tp, n_pairs)
    if tp == n_pairs and n_pairs > 1 and n_w_blocks == 1:
        tp = pl.cdiv(n_pairs, 2)      # keep >= 2 grid steps: v7x has 2 TensorCores
    return int(tp)


def _rows_per_block(m, c4, c2out, in_bytes, out_bytes):
    """Token rows per grid step for the fallback kernel (multiple of 8)."""
    if m <= 8:
        return m                                   # one full block (== array dim)
    per_row = c4 * in_bytes + c2out * out_bytes
    tm = min(_TARGET_TOKENS, max(8, _TILE_VMEM_BUDGET // (2 * per_row)))
    tm = max(8, (tm // 8) * 8)
    if 2 * tm > m:                                 # keep >= 2 grid steps
        tm = max(8, (pl.cdiv(m, 2) // 8) * 8)
    return int(min(tm, m))


# --------------------------------------------------------------------------- #
# public forward
# --------------------------------------------------------------------------- #
def patch_merging(x, H, W, w_reduction, gamma, beta):
    """Equivalent of PatchMerging.forward.

    x:            (B, H*W, C)
    w_reduction:  (2C, 4C)   -- nn.Linear(4C, 2C, bias=False) weight (out, in)
    gamma, beta:  (4C,)      -- LayerNorm(4C) affine params
    returns:      (B, ceil(H/2)*ceil(W/2), 2C)
    """
    B, L, C = x.shape
    assert L == H * W, "input feature has wrong size"
    c4 = 4 * C
    c2out = w_reduction.shape[0]
    assert w_reduction.shape == (c2out, c4)
    assert gamma.shape == (c4,) and beta.shape == (c4,)

    x = x.reshape(B, H, W, C)
    pad_h, pad_w = H % 2, W % 2
    if pad_h or pad_w:                       # bottom/right pad, like F.pad in the module
        x = jnp.pad(x, ((0, 0), (0, pad_h), (0, pad_w), (0, 0)))
    Hp, Wp = H + pad_h, W + pad_w
    H2, W2 = Hp // 2, Wp // 2
    L2 = H2 * W2
    out_dtype = x.dtype

    w_fused, bias = _fold_params(w_reduction, gamma, beta, x.dtype)
    in_b = jnp.dtype(x.dtype).itemsize
    out_b = jnp.dtype(out_dtype).itemsize

    if W2 >= 8:
        # ------------------ fast path: zero-copy 2x2 gather ------------------ #
        # Free row-major reshape: (B, Hp, Wp, C) -> (P, 2, W2, 2C) where
        #   P = B*Hp/2 row-pairs, axis 1 = row parity,
        #   last dim = [even-col C channels | odd-col C channels].
        # The merged (M, 4C) activation is never written to HBM.
        n_pairs = B * H2
        xr = x.reshape(n_pairs, 2, W2, 2 * C)
        # kernel-internal feature order: even row -> [x0|x2], odd row -> [x1|x3];
        # permute the fused-weight rows to match.
        w_even = jnp.concatenate([w_fused[0:C], w_fused[2 * C:3 * C]], axis=0)
        w_odd = jnp.concatenate([w_fused[C:2 * C], w_fused[3 * C:4 * C]], axis=0)

        tw2 = _w_tile(W2)
        n_w = pl.cdiv(W2, tw2)
        tp = _pairs_per_block(n_pairs, tw2, n_w, c4, c2out, in_b, out_b)

        out = pl.pallas_call(
            _pm_kernel_pairs,
            out_shape=jax.ShapeDtypeStruct((n_pairs, W2, c2out), out_dtype),
            grid=(pl.cdiv(n_pairs, tp), n_w),
            in_specs=[
                pl.BlockSpec((tp, None, tw2, 2 * C), lambda i, j: (i, 0, j, 0)),
                pl.BlockSpec((tp, None, tw2, 2 * C), lambda i, j: (i, 1, j, 0)),
                pl.BlockSpec((2 * C, c2out), lambda i, j: (0, 0)),
                pl.BlockSpec((2 * C, c2out), lambda i, j: (0, 0)),
                pl.BlockSpec((1, c2out), lambda i, j: (0, 0)),
            ],
            out_specs=pl.BlockSpec((tp, tw2, c2out), lambda i, j: (i, j, 0)),
            compiler_params=pltpu.CompilerParams(
                dimension_semantics=("parallel", "parallel"),
                vmem_limit_bytes=_VMEM_LIMIT),
        )(xr, xr, w_even, w_odd, bias)
        return out.reshape(B, L2, c2out)

    # ------------- fallback (tiny W2 < 8): merge in the wrapper ------------- #
    x0 = x[:, 0::2, 0::2, :]
    x1 = x[:, 1::2, 0::2, :]
    x2 = x[:, 0::2, 1::2, :]
    x3 = x[:, 1::2, 1::2, :]
    xm = jnp.concatenate([x0, x1, x2, x3], axis=-1).reshape(B * L2, c4)
    m = B * L2
    tm = _rows_per_block(m, c4, c2out, in_b, out_b)
    out = pl.pallas_call(
        _pm_kernel_flat,
        out_shape=jax.ShapeDtypeStruct((m, c2out), out_dtype),
        grid=(pl.cdiv(m, tm),),
        in_specs=[
            pl.BlockSpec((tm, c4), lambda i: (i, 0)),
            pl.BlockSpec((c4, c2out), lambda i: (0, 0)),
            pl.BlockSpec((1, c2out), lambda i: (0, 0)),
        ],
        out_specs=pl.BlockSpec((tm, c2out), lambda i: (i, 0)),
        compiler_params=pltpu.CompilerParams(
            dimension_semantics=("parallel",),
            vmem_limit_bytes=_VMEM_LIMIT),
    )(xm, w_fused, bias)
    return out.reshape(B, L2, c2out)


# --------------------------------------------------------------------------- #
# pure-jnp reference (port of the PyTorch module) + demo
# --------------------------------------------------------------------------- #
def _reference_patch_merging(x, H, W, w_reduction, gamma, beta):
    B, L, C = x.shape
    xr = x.reshape(B, H, W, C).astype(jnp.float32)
    ph, pw = H % 2, W % 2
    if ph or pw:
        xr = jnp.pad(xr, ((0, 0), (0, ph), (0, pw), (0, 0)))
    x0 = xr[:, 0::2, 0::2, :]
    x1 = xr[:, 1::2, 0::2, :]
    x2 = xr[:, 0::2, 1::2, :]
    x3 = xr[:, 1::2, 1::2, :]
    xm = jnp.concatenate([x0, x1, x2, x3], axis=-1).reshape(B, -1, 4 * C)
    mean = jnp.mean(xm, axis=-1, keepdims=True)
    var = jnp.mean((xm - mean) ** 2, axis=-1, keepdims=True)
    xn = (xm - mean) * jax.lax.rsqrt(var + _LN_EPS)
    xn = xn * gamma.astype(jnp.float32) + beta.astype(jnp.float32)
    return xn @ jnp.transpose(w_reduction).astype(jnp.float32)


if __name__ == "__main__":
    key = jax.random.PRNGKey(0)
    kx1, kx2, kw = jax.random.split(key, 3)

    B, C = 2, 4
    c4, c2 = 4 * C, 2 * C
    w_reduction = jax.random.normal(kw, (c2, c4), dtype=jnp.float32) * 0.02
    gamma = 1.0 + 0.1 * jnp.arange(c4, dtype=jnp.float32) / c4
    beta = 0.05 - 0.01 * jnp.arange(c4, dtype=jnp.float32) / c4

    # case 1: even spatial dims -> zero-copy gather fast path
    H1, W1 = 16, 16
    xa = jax.random.normal(kx1, (B, H1 * W1, C), dtype=jnp.float32)
    out1 = jax.block_until_ready(patch_merging(xa, H1, W1, w_reduction, gamma, beta))
    ref1 = _reference_patch_merging(xa, H1, W1, w_reduction, gamma, beta)
    assert out1.shape == (B, (H1 // 2) * (W1 // 2), c2), out1.shape
    assert jnp.allclose(out1.astype(jnp.float32), ref1, atol=1e-4, rtol=1e-4), (
        float(jnp.max(jnp.abs(out1.astype(jnp.float32) - ref1))))

    # case 2: odd spatial dims -> parity pad + fallback (merged-token) kernel
    Hb, Wb = 7, 7
    xb = jax.random.normal(kx2, (B, Hb * Wb, C), dtype=jnp.float32)
    out2 = jax.block_until_ready(patch_merging(xb, Hb, Wb, w_reduction, gamma, beta))
    ref2 = _reference_patch_merging(xb, Hb, Wb, w_reduction, gamma, beta)
    assert out2.shape == (B, 4 * 4, c2), out2.shape
    assert jnp.allclose(out2.astype(jnp.float32), ref2, atol=1e-4, rtol=1e-4), (
        float(jnp.max(jnp.abs(out2.astype(jnp.float32) - ref2))))

    print("KERNEL_OK")
</pallas_src>

<mosaic_0001>
module attributes {stable_mosaic.version = 11 : i64} {
  func.func @_pm_kernel_pairs(%arg0: i32, %arg1: i32, %arg2: memref<8x1x8x8xf32, #tpu.memory_space<vmem>>, %arg3: memref<8x1x8x8xf32, #tpu.memory_space<vmem>>, %arg4: memref<8x8xf32, #tpu.memory_space<vmem>>, %arg5: memref<8x8xf32, #tpu.memory_space<vmem>>, %arg6: memref<1x8xf32, #tpu.memory_space<vmem>>, %arg7: memref<8x8x8xf32, #tpu.memory_space<vmem>>) attributes {dimension_semantics = [#tpu.dimension_semantics<parallel>, #tpu.dimension_semantics<parallel>], iteration_bounds = array<i64: 2, 1>, scalar_prefetch = 0 : i64, scratch_operands = 0 : i64, tpu.core_type = #tpu.core_type<tc>, window_params = [{transform_indices = @transform_0, window_bounds = array<i64: 8, 1, 8, 8>}, {transform_indices = @transform_1, window_bounds = array<i64: 8, 1, 8, 8>}, {pipeline_mode = #tpu.pipeline_mode<synchronous>, transform_indices = @transform_2, window_bounds = array<i64: 8, 8>}, {pipeline_mode = #tpu.pipeline_mode<synchronous>, transform_indices = @transform_3, window_bounds = array<i64: 8, 8>}, {pipeline_mode = #tpu.pipeline_mode<synchronous>, transform_indices = @transform_4, window_bounds = array<i64: 1, 8>}, {transform_indices = @transform_5, window_bounds = array<i64: 8, 8, 8>}]} {
    %c0 = arith.constant 0 : index
    %c0_0 = arith.constant 0 : index
    %c0_1 = arith.constant 0 : index
    %c0_2 = arith.constant 0 : index
    %0 = vector.load %arg2[%c0, %c0_0, %c0_1, %c0_2] : memref<8x1x8x8xf32, #tpu.memory_space<vmem>>, vector<8x1x8x8xf32>
    %1 = vector.shape_cast %0 : vector<8x1x8x8xf32> to vector<8x8x8xf32>
    %2 = vector.shape_cast %1 : vector<8x8x8xf32> to vector<64x8xf32>
    %c0_3 = arith.constant 0 : index
    %c0_4 = arith.constant 0 : index
    %c0_5 = arith.constant 0 : index
    %c0_6 = arith.constant 0 : index
    %3 = vector.load %arg3[%c0_3, %c0_4, %c0_5, %c0_6] : memref<8x1x8x8xf32, #tpu.memory_space<vmem>>, vector<8x1x8x8xf32>
    %4 = vector.shape_cast %3 : vector<8x1x8x8xf32> to vector<8x8x8xf32>
    %5 = vector.shape_cast %4 : vector<8x8x8xf32> to vector<64x8xf32>
    %cst = arith.constant dense<0.000000e+00> : vector<64xf32>
    %6 = vector.multi_reduction <add>, %2, %cst [1] : vector<64x8xf32> to vector<64xf32>
    %7 = vector.shape_cast %6 : vector<64xf32> to vector<64x1xf32>
    %cst_7 = arith.constant dense<0.000000e+00> : vector<64xf32>
    %8 = vector.multi_reduction <add>, %5, %cst_7 [1] : vector<64x8xf32> to vector<64xf32>
    %9 = vector.shape_cast %8 : vector<64xf32> to vector<64x1xf32>
    %10 = arith.addf %7, %9 : vector<64x1xf32>
    %11 = arith.mulf %2, %2 : vector<64x8xf32>
    %cst_8 = arith.constant dense<0.000000e+00> : vector<64xf32>
    %12 = vector.multi_reduction <add>, %11, %cst_8 [1] : vector<64x8xf32> to vector<64xf32>
    %13 = vector.shape_cast %12 : vector<64xf32> to vector<64x1xf32>
    %14 = arith.mulf %5, %5 : vector<64x8xf32>
    %cst_9 = arith.constant dense<0.000000e+00> : vector<64xf32>
    %15 = vector.multi_reduction <add>, %14, %cst_9 [1] : vector<64x8xf32> to vector<64xf32>
    %16 = vector.shape_cast %15 : vector<64xf32> to vector<64x1xf32>
    %17 = arith.addf %13, %16 : vector<64x1xf32>
    %cst_10 = arith.constant 6.250000e-02 : f32
    %18 = vector.broadcast %cst_10 : f32 to vector<64x1xf32>
    %19 = arith.mulf %10, %18 : vector<64x1xf32>
    %cst_11 = arith.constant 6.250000e-02 : f32
    %20 = vector.broadcast %cst_11 : f32 to vector<64x1xf32>
    %21 = arith.mulf %17, %20 : vector<64x1xf32>
    %22 = arith.mulf %19, %19 : vector<64x1xf32>
    %23 = arith.subf %21, %22 : vector<64x1xf32>
    %cst_12 = arith.constant 9.99999974E-6 : f32
    %24 = vector.broadcast %cst_12 : f32 to vector<64x1xf32>
    %25 = arith.addf %23, %24 : vector<64x1xf32>
    %26 = math.rsqrt %25 : vector<64x1xf32>
    %27 = vector.broadcast %19 : vector<64x1xf32> to vector<64x8xf32>
    %28 = arith.subf %2, %27 : vector<64x8xf32>
    %29 = vector.broadcast %26 : vector<64x1xf32> to vector<64x8xf32>
    %30 = arith.mulf %28, %29 : vector<64x8xf32>
    %31 = vector.broadcast %19 : vector<64x1xf32> to vector<64x8xf32>
    %32 = arith.subf %5, %31 : vector<64x8xf32>
    %33 = vector.broadcast %26 : vector<64x1xf32> to vector<64x8xf32>
    %34 = arith.mulf %32, %33 : vector<64x8xf32>
    %c0_13 = arith.constant 0 : index
    %c0_14 = arith.constant 0 : index
    %35 = vector.load %arg4[%c0_13, %c0_14] : memref<8x8xf32, #tpu.memory_space<vmem>>, vector<8x8xf32>
    %cst_15 = arith.constant dense<0.000000e+00> : vector<64x8xf32>
    %36 = tpu.matmul %30, %35, %cst_15 {dimension_numbers = #tpu.dot_dimension_numbers<[1], [0], [0], [1], [0, 0, 1, 1], [], []>} : vector<64x8xf32>, vector<8x8xf32>, vector<64x8xf32> -> vector<64x8xf32>
    %c0_16 = arith.constant 0 : index
    %c0_17 = arith.constant 0 : index
    %37 = vector.load %arg5[%c0_16, %c0_17] : memref<8x8xf32, #tpu.memory_space<vmem>>, vector<8x8xf32>
    %cst_18 = arith.constant dense<0.000000e+00> : vector<64x8xf32>
    %38 = tpu.matmul %34, %37, %cst_18 {dimension_numbers = #tpu.dot_dimension_numbers<[1], [0], [0], [1], [0, 0, 1, 1], [], []>} : vector<64x8xf32>, vector<8x8xf32>, vector<64x8xf32> -> vector<64x8xf32>
    %39 = arith.addf %36, %38 : vector<64x8xf32>
    %c0_19 = arith.constant 0 : index
    %c0_20 = arith.constant 0 : index
    %40 = vector.load %arg6[%c0_19, %c0_20] : memref<1x8xf32, #tpu.memory_space<vmem>>, vector<1x8xf32>
    %41 = vector.broadcast %40 : vector<1x8xf32> to vector<64x8xf32>
    %42 = arith.addf %39, %41 : vector<64x8xf32>
    %43 = vector.shape_cast %42 : vector<64x8xf32> to vector<8x8x8xf32>
    %c0_21 = arith.constant 0 : index
    %c0_22 = arith.constant 0 : index
    %c0_23 = arith.constant 0 : index
    %44 = vector.load %arg7[%c0_21, %c0_22, %c0_23] : memref<8x8x8xf32, #tpu.memory_space<vmem>>, vector<8x8x8xf32>
    tpu.vector_store %arg7[%c0_21, %c0_22, %c0_23], %43 {strides = array<i32>} : memref<8x8x8xf32, #tpu.memory_space<vmem>>, vector<8x8x8xf32>,
    return
  }
  func.func @transform_0(%arg0: i32, %arg1: i32) -> (i32, i32, i32, i32) {
    %c0_i32 = arith.constant 0 : i32
    %c0_i32_0 = arith.constant 0 : i32
    %c0_i32_1 = arith.constant 0 : i32
    return %arg0, %c0_i32, %arg1, %c0_i32_0 : i32, i32, i32, i32
  }
  func.func @transform_1(%arg0: i32, %arg1: i32) -> (i32, i32, i32, i32) {
    %c1_i32 = arith.constant 1 : i32
    %c0_i32 = arith.constant 0 : i32
    %c0_i32_0 = arith.constant 0 : i32
    return %arg0, %c1_i32, %arg1, %c0_i32 : i32, i32, i32, i32
  }
  func.func @transform_2(%arg0: i32, %arg1: i32) -> (i32, i32) {
    %c0_i32 = arith.constant 0 : i32
    %c0_i32_0 = arith.constant 0 : i32
    %c0_i32_1 = arith.constant 0 : i32
    return %c0_i32, %c0_i32_0 : i32, i32
  }
  func.func @transform_3(%arg0: i32, %arg1: i32) -> (i32, i32) {
    %c0_i32 = arith.constant 0 : i32
    %c0_i32_0 = arith.constant 0 : i32
    %c0_i32_1 = arith.constant 0 : i32
    return %c0_i32, %c0_i32_0 : i32, i32
  }
  func.func @transform_4(%arg0: i32, %arg1: i32) -> (i32, i32) {
    %c0_i32 = arith.constant 0 : i32
    %c0_i32_0 = arith.constant 0 : i32
    %c0_i32_1 = arith.constant 0 : i32
    return %c0_i32, %c0_i32_0 : i32, i32
  }
  func.func @transform_5(%arg0: i32, %arg1: i32) -> (i32, i32, i32) {
    %c0_i32 = arith.constant 0 : i32
    %c0_i32_0 = arith.constant 0 : i32
    return %arg0, %arg1, %c0_i32 : i32, i32, i32
  }
}

</mosaic_0001>

<llo_original>
// kernel: tpu_custom_call.1
$region0: #{tpu_custom_call.1}
  #allocation0 [shape = 'u32[]', space=smem, size = 0x4, offset = 0x4, fixed_abs, tag = 'smem constant byte address 0x4 - core index']
  #allocation1 [shape = 'u32[144,128]{1,0:T(1,128)}', space=vmem, size = 0x12000, scoped, tag = 'internal scratch']
  %s0 = inlined_call_operand.vmem [shape: f32[16,2,8,8], index: 0, kind: input, shape index: {}]
  %s1 = inlined_call_operand.vmem [shape: f32[16,2,8,8], index: 1, kind: input, shape index: {}]
  %s2 = inlined_call_operand.vmem [shape: f32[8,8], index: 2, kind: input, shape index: {}]
  %s3 = inlined_call_operand.vmem [shape: f32[8,8], index: 3, kind: input, shape index: {}]
  %s4 = inlined_call_operand.vmem [shape: f32[1,8], index: 4, kind: input, shape index: {}]
  %s5 = inlined_call_operand.vmem [shape: f32[16,8,8], index: 5, kind: output, shape index: {}]
  %s6 = sld [smem:[#allocation0]]
  $region129: #{tpu_custom_call.1} parent=0
    _
  %s8 = ssub.s32 1, %s6
  %s9 = scalar_select 0, %s8, %s6
  $region1: #{tpu_custom_call.1} parent=0
    #allocation2 [shape = 'u8[65536]{0}', space=vmem, size = 0x10000, scoped, tag = 'input window, operand 0']
    #allocation3 [shape = 'u8[65536]{0}', space=vmem, size = 0x10000, scoped, tag = 'input window, operand 1']
    loop: start=0, step=1, limit=4
    $region2: #{tpu_custom_call.1} parent=1 // loop_pre_header
      _
    $region3: #{tpu_custom_call.1} parent=1 // loop_header
      %s11 = sphi 0, %s15
      %p12 = scmp.ge.s32.totalorder %s11, 4
      %s18 = sphi 0, %s30
      %s19 = sphi 0, %s26
      %s20 = sphi 0, %s18
      %s21 = sphi 0, %s19
      %s22 = sphi 0, %s20
      %s23 = sphi 0, %s21
      %s35 = sphi 0, %s37
      %s38 = sphi 0, %s35
      %s39 = sphi 0, %s38
      %s55 = sphi 0, %s39
      %s63 = sphi 0, %s65
      %s66 = sphi 0, %s63
      %s67 = sphi 0, %s66
      %s83 = sphi 0, %s67
      %s87 = sphi 0, %s87
      %s89 = sphi 0, %s87
      %s90 = sphi 0, %s89
      %s104 = sphi 0, %s90
      %s108 = sphi 0, %s108
      %s110 = sphi 0, %s108
      %s111 = sphi 0, %s110
      %s125 = sphi 0, %s111
      %s129 = sphi 0, %s129
      %s131 = sphi 0, %s129
      %s132 = sphi 0, %s131
      %s146 = sphi 0, %s132
      %s154 = sphi 0, %s156
      %s157 = sphi 0, %s154
      %s158 = sphi 0, %s157
      %s174 = sphi 0, %s158
    $region4: #{tpu_custom_call.1} parent=1 // loop_header_branch
      %14 = sbr.rel (%p12) target = $region8
    $region5: #{tpu_custom_call.1} parent=1 // loop_body
      %s16 = ssub.s32 %s11, 1
      %s17 = ssub.s32 %s11, 2
      %s24 = sadd.s32 1, %s19
      %p25 = scmp.ge.s32.totalorder %s24, 1
      %s26 = scalar_select %p25, 0, %s24
      %s27 = sadd.s32 1, %s18
      %s28 = scalar_select %p25, %s27, %s18
      %p29 = scmp.ge.s32.totalorder %s28, 2
      %s30 = scalar_select %p29, 0, %s28
      %s31 = ssub.s32 %s18, %s30
      %s32 = ssub.s32 %s19, %s26
      %s33 = sor.u32 %s31, %s32
      %p34 = scmp.eq.s32.totalorder %s33, 0
      %s36 = sadd.s32 %s35, 1
      %s37 = scalar_select %p34, %s35, %s36
      %p40 = pneg %p34
      %p41 = scmp.eq.s32.totalorder %s11, 1
      %p42 = por %p40, %p41
      %p43 = scmp.ne.s32.totalorder %s35, %s38
      %p44 = scmp.eq.s32.totalorder %s11, 0
      %p45 = por %p43, %p44
      %p46 = scmp.ne.s32.totalorder %s35, %s38
      %p47 = scmp.eq.s32.totalorder %s16, 1
      %p48 = por %p46, %p47
      %p49 = scmp.ne.s32.totalorder %s38, %s39
      %p50 = scmp.eq.s32.totalorder %s16, 0
      %p51 = por %p49, %p50
      %p52 = scmp.ne.s32.totalorder %s38, %s39
      %p53 = scmp.eq.s32.totalorder %s17, 1
      %p54 = por %p52, %p53
      %p56 = scmp.ne.s32.totalorder %s39, %s55
      %p57 = scmp.eq.s32.totalorder %s17, 0
      %p58 = por %p56, %p57
      %s59 = ssub.s32 %s18, %s30
      %s60 = ssub.s32 %s19, %s26
      %s61 = sor.u32 %s59, %s60
      %p62 = scmp.eq.s32.totalorder %s61, 0
      %s64 = sadd.s32 %s63, 1
      %s65 = scalar_select %p62, %s63, %s64
      %p68 = pneg %p62
      %p69 = scmp.eq.s32.totalorder %s11, 1
      %p70 = por %p68, %p69
      %p71 = scmp.ne.s32.totalorder %s63, %s66
      %p72 = scmp.eq.s32.totalorder %s11, 0
      %p73 = por %p71, %p72
      %p74 = scmp.ne.s32.totalorder %s63, %s66
      %p75 = scmp.eq.s32.totalorder %s16, 1
      %p76 = por %p74, %p75
      %p77 = scmp.ne.s32.totalorder %s66, %s67
      %p78 = scmp.eq.s32.totalorder %s16, 0
      %p79 = por %p77, %p78
      %p80 = scmp.ne.s32.totalorder %s66, %s67
      %p81 = scmp.eq.s32.totalorder %s17, 1
      %p82 = por %p80, %p81
      %p84 = scmp.ne.s32.totalorder %s67, %s83
      %p85 = scmp.eq.s32.totalorder %s17, 0
      %p86 = por %p84, %p85
      %s88 = sadd.s32 %s87, 1
      %p91 = scmp.eq.s32.totalorder %s11, 1
      %p92 = scmp.ne.s32.totalorder %s87, %s89
      %p93 = scmp.eq.s32.totalorder %s11, 0
      %p94 = por %p92, %p93
      %p95 = scmp.ne.s32.totalorder %s87, %s89
      %p96 = scmp.eq.s32.totalorder %s16, 1
      %p97 = por %p95, %p96
      %p98 = scmp.ne.s32.totalorder %s89, %s90
      %p99 = scmp.eq.s32.totalorder %s16, 0
      %p100 = por %p98, %p99
      %p101 = scmp.ne.s32.totalorder %s89, %s90
      %p102 = scmp.eq.s32.totalorder %s17, 1
      %p103 = por %p101, %p102
      %p105 = scmp.ne.s32.totalorder %s90, %s104
      %p106 = scmp.eq.s32.totalorder %s17, 0
      %p107 = por %p105, %p106
      %s109 = sadd.s32 %s108, 1
      %p112 = scmp.eq.s32.totalorder %s11, 1
      %p113 = scmp.ne.s32.totalorder %s108, %s110
      %p114 = scmp.eq.s32.totalorder %s11, 0
      %p115 = por %p113, %p114
      %p116 = scmp.ne.s32.totalorder %s108, %s110
      %p117 = scmp.eq.s32.totalorder %s16, 1
      %p118 = por %p116, %p117
      %p119 = scmp.ne.s32.totalorder %s110, %s111
      %p120 = scmp.eq.s32.totalorder %s16, 0
      %p121 = por %p119, %p120
      %p122 = scmp.ne.s32.totalorder %s110, %s111
      %p123 = scmp.eq.s32.totalorder %s17, 1
      %p124 = por %p122, %p123
      %p126 = scmp.ne.s32.totalorder %s111, %s125
      %p127 = scmp.eq.s32.totalorder %s17, 0
      %p128 = por %p126, %p127
      %s130 = sadd.s32 %s129, 1
      %p133 = scmp.eq.s32.totalorder %s11, 1
      %p134 = scmp.ne.s32.totalorder %s129, %s131
      %p135 = scmp.eq.s32.totalorder %s11, 0
      %p136 = por %p134, %p135
      %p137 = scmp.ne.s32.totalorder %s129, %s131
      %p138 = scmp.eq.s32.totalorder %s16, 1
      %p139 = por %p137, %p138
      %p140 = scmp.ne.s32.totalorder %s131, %s132
      %p141 = scmp.eq.s32.totalorder %s16, 0
      %p142 = por %p140, %p141
      %p143 = scmp.ne.s32.totalorder %s131, %s132
      %p144 = scmp.eq.s32.totalorder %s17, 1
      %p145 = por %p143, %p144
      %p147 = scmp.ne.s32.totalorder %s132, %s146
      %p148 = scmp.eq.s32.totalorder %s17, 0
      %p149 = por %p147, %p148
      %s150 = ssub.s32 %s18, %s30
      %s151 = ssub.s32 %s19, %s26
      %s152 = sor.u32 %s150, %s151
      %p153 = scmp.eq.s32.totalorder %s152, 0
      %s155 = sadd.s32 %s154, 1
      %s156 = scalar_select %p153, %s154, %s155
      %p159 = pneg %p153
      %p160 = scmp.eq.s32.totalorder %s11, 1
      %p161 = por %p159, %p160
      %p162 = scmp.ne.s32.totalorder %s154, %s157
      %p163 = scmp.eq.s32.totalorder %s11, 0
      %p164 = por %p162, %p163
      %p165 = scmp.ne.s32.totalorder %s154, %s157
      %p166 = scmp.eq.s32.totalorder %s16, 1
      %p167 = por %p165, %p166
      %p168 = scmp.ne.s32.totalorder %s157, %s158
      %p169 = scmp.eq.s32.totalorder %s16, 0
      %p170 = por %p168, %p169
      %p171 = scmp.ne.s32.totalorder %s157, %s158
      %p172 = scmp.eq.s32.totalorder %s17, 1
      %p173 = por %p171, %p172
      %p175 = scmp.ne.s32.totalorder %s158, %s174
      %p176 = scmp.eq.s32.totalorder %s17, 0
      %p177 = por %p175, %p176
      %p178 = scmp.le.s32.totalorder 1, %s11
      %p179 = scmp.lt.s32.totalorder %s11, 3
      %p180 = pnand %p178, %p179
      %p181 = pneg %p180
      // Predicated region
      $region9: #{tpu_custom_call.1} parent=5 // pred_check
        _
      $region10: #{tpu_custom_call.1} parent=5 // pred_check_branch
        %183 = sbr.rel (%p180) target = $region12
      $region11: #{tpu_custom_call.1} parent=5 // pred_region
        %s184 = ssub.s32 %s11, 1
        // Predicated region
        $region13: #{tpu_custom_call.1} parent=11 // pred_check
          %p185 = pneg %p100
        $region14: #{tpu_custom_call.1} parent=11 // pred_check_branch
          %187 = sbr.rel (%p185) target = $region16
        $region15: #{tpu_custom_call.1} parent=11 // pred_region
          _
        $region16: #{tpu_custom_call.1} parent=11 // pred_fallthru
          _
        // Predicated region
        $region17: #{tpu_custom_call.1} parent=11 // pred_check
          %p188 = pneg %p121
        $region18: #{tpu_custom_call.1} parent=11 // pred_check_branch
          %190 = sbr.rel (%p188) target = $region20
        $region19: #{tpu_custom_call.1} parent=11 // pred_region
          _
        $region20: #{tpu_custom_call.1} parent=11 // pred_fallthru
          _
        // Predicated region
        $region21: #{tpu_custom_call.1} parent=11 // pred_check
          %p191 = pneg %p142
        $region22: #{tpu_custom_call.1} parent=11 // pred_check_branch
          %193 = sbr.rel (%p191) target = $region24
        $region23: #{tpu_custom_call.1} parent=11 // pred_region
          _
        $region24: #{tpu_custom_call.1} parent=11 // pred_fallthru
          _
      $region12: #{tpu_custom_call.1} parent=5 // pred_fallthru
        _
      %p194 = scmp.lt.s32.totalorder %s11, 2
      // Predicated region
      $region25: #{tpu_custom_call.1} parent=5 // pred_check
        %p195 = pneg %p194
      $region26: #{tpu_custom_call.1} parent=5 // pred_check_branch
        %197 = sbr.rel (%p195) target = $region28
      $region27: #{tpu_custom_call.1} parent=5 // pred_region
        // Predicated region
        $region29: #{tpu_custom_call.1} parent=27 // pred_check
          %p198 = pneg %p45
        $region30: #{tpu_custom_call.1} parent=27 // pred_check_branch
          %200 = sbr.rel (%p198) target = $region32
        $region31: #{tpu_custom_call.1} parent=27 // pred_region
          %s201 = sand.u32 %s35, 1
          %s202 = sand.u32 %s35, 1
          %s203 = smul.addr %s202, 64
          %s204 = scalar_lea.vmem [#allocation2], %s203
          %s205 = smul.u32 8, %s18
          %s206 = smul.addr %s205, 2
          %s207 = sadd.s32 %s19, %s206
          %s208 = smul.addr %s207, 8
          %s209 = scalar_lea.vmem %s0, %s208
          // Predicated region
          $region33: #{tpu_custom_call.1} parent=31 // pred_check
            _
          $region34: #{tpu_custom_call.1} parent=31 // pred_check_branch
            %211 = sbr.rel (0) target = $region36
          $region35: #{tpu_custom_call.1} parent=31 // pred_region
            // Predicated region
            $region37: #{tpu_custom_call.1} parent=35 // pred_check
              _
            $region38: #{tpu_custom_call.1} parent=35 // pred_check_branch
              %213 = sbr.rel (0) target = $region40
            $region39: #{tpu_custom_call.1} parent=35 // pred_region
              // Predicated region
              $region52: #{tpu_custom_call.1} parent=39 // pred_check
                _
              $region53: #{tpu_custom_call.1} parent=39 // pred_check_branch
                %243 = sbr.rel (0) target = $region55
              $region54: #{tpu_custom_call.1} parent=39 // pred_region
                loop: start=0, step=1, limit=1
                $region56: #{tpu_custom_call.1} parent=54 // loop_pre_header
                  _
                $region57: #{tpu_custom_call.1} parent=54 // loop_header
                  %s245 = sphi 0, %s249
                  %p246 = scmp.ge.s32.totalorder %s245, 1
                  %s250 = sphi %s209, %s209
                  %s251 = sphi %s204, %s204
                $region58: #{tpu_custom_call.1} parent=54 // loop_header_branch
                  %248 = sbr.rel (%p246) target = $region62
                $region59: #{tpu_custom_call.1} parent=54 // loop_body
                  %v252 = vld [vmem:[%s250] sm:$0xff]
                  %253 = vst [vmem:[%s251] sm:$0xff] %v252
                  %v254 = vld [vmem:[%s250 + $0x10] sm:$0xff]
                  %255 = vst [vmem:[%s251 + $0x8] sm:$0xff] %v254
                  %v256 = vld [vmem:[%s250 + $0x20] sm:$0xff]
                  %257 = vst [vmem:[%s251 + $0x10] sm:$0xff] %v256
                  %v258 = vld [vmem:[%s250 + $0x30] sm:$0xff]
                  %259 = vst [vmem:[%s251 + $0x18] sm:$0xff] %v258
                  %v260 = vld [vmem:[%s250 + $0x40] sm:$0xff]
                  %261 = vst [vmem:[%s251 + $0x20] sm:$0xff] %v260
                  %v262 = vld [vmem:[%s250 + $0x50] sm:$0xff]
                  %263 = vst [vmem:[%s251 + $0x28] sm:$0xff] %v262
                  %v264 = vld [vmem:[%s250 + $0x60] sm:$0xff]
                  %265 = vst [vmem:[%s251 + $0x30] sm:$0xff] %v264
                  %v266 = vld [vmem:[%s250 + $0x70] sm:$0xff]
                  %267 = vst [vmem:[%s251 + $0x38] sm:$0xff] %v266
                $region60: #{tpu_custom_call.1} parent=54 // loop_footer
                  %s249 = sadd.s32 1, %s245
                $region61: #{tpu_custom_call.1} parent=54 // loop_footer_branch
                  %244 = sbr.rel target = $region57
                $region62: #{tpu_custom_call.1} parent=54 // loop_exit
                  _
              $region55: #{tpu_custom_call.1} parent=39 // pred_fallthru
                _
              // Predicated region
              $region63: #{tpu_custom_call.1} parent=39 // pred_check
                _
              $region64: #{tpu_custom_call.1} parent=39 // pred_check_branch
                %269 = sbr.rel target = $region66
              $region65: #{tpu_custom_call.1} parent=39 // pred_region
                _
              $region66: #{tpu_custom_call.1} parent=39 // pred_fallthru
                _
            $region40: #{tpu_custom_call.1} parent=35 // pred_fallthru
              _
            // Predicated region
            $region41: #{tpu_custom_call.1} parent=35 // pred_check
              _
            $region42: #{tpu_custom_call.1} parent=35 // pred_check_branch
              %215 = sbr.rel target = $region44
            $region43: #{tpu_custom_call.1} parent=35 // pred_region
              %s217 = ssub.s32 256, 1
              loop: start=0, step=1, limit=1
              $region45: #{tpu_custom_call.1} parent=43 // loop_pre_header
                _
              $region46: #{tpu_custom_call.1} parent=43 // loop_header
                %s219 = sphi 0, %s223
                %p220 = scmp.ge.s32.totalorder %s219, 1
                %s224 = sphi %s209, %s209
                %s225 = sphi %s204, %s204
              $region47: #{tpu_custom_call.1} parent=43 // loop_header_branch
                %222 = sbr.rel (%p220) target = $region51
              $region48: #{tpu_custom_call.1} parent=43 // loop_body
                %v226 = vld [vmem:[%s224] sm:%s217]
                %227 = vst [vmem:[%s225] sm:%s217] %v226
                %v228 = vld [vmem:[%s224 + $0x10] sm:%s217]
                %229 = vst [vmem:[%s225 + $0x8] sm:%s217] %v228
                %v230 = vld [vmem:[%s224 + $0x20] sm:%s217]
                %231 = vst [vmem:[%s225 + $0x10] sm:%s217] %v230
                %v232 = vld [vmem:[%s224 + $0x30] sm:%s217]
                %233 = vst [vmem:[%s225 + $0x18] sm:%s217] %v232
                %v234 = vld [vmem:[%s224 + $0x40] sm:%s217]
                %235 = vst [vmem:[%s225 + $0x20] sm:%s217] %v234
                %v236 = vld [vmem:[%s224 + $0x50] sm:%s217]
                %237 = vst [vmem:[%s225 + $0x28] sm:%s217] %v236
                %v238 = vld [vmem:[%s224 + $0x60] sm:%s217]
                %239 = vst [vmem:[%s225 + $0x30] sm:%s217] %v238
                %v240 = vld [vmem:[%s224 + $0x70] sm:%s217]
                %241 = vst [vmem:[%s225 + $0x38] sm:%s217] %v240
              $region49: #{tpu_custom_call.1} parent=43 // loop_footer
                %s223 = sadd.s32 1, %s219
              $region50: #{tpu_custom_call.1} parent=43 // loop_footer_branch
                %218 = sbr.rel target = $region46
              $region51: #{tpu_custom_call.1} parent=43 // loop_exit
                _
            $region44: #{tpu_custom_call.1} parent=35 // pred_fallthru
              _
          $region36: #{tpu_custom_call.1} parent=31 // pred_fallthru
            _
          %270 = vnop
        $region32: #{tpu_custom_call.1} parent=27 // pred_fallthru
          _
        // Predicated region
        $region67: #{tpu_custom_call.1} parent=27 // pred_check
          %p271 = pneg %p73
        $region68: #{tpu_custom_call.1} parent=27 // pred_check_branch
          %273 = sbr.rel (%p271) target = $region70
        $region69: #{tpu_custom_call.1} parent=27 // pred_region
          %s274 = sand.u32 %s63, 1
          %s275 = sand.u32 %s63, 1
          %s276 = smul.addr %s275, 64
          %s277 = scalar_lea.vmem [#allocation3], %s276
          %s278 = smul.u32 8, %s18
          %s279 = sadd.s32 %s19, 1
          %s280 = smul.addr %s278, 2
          %s281 = sadd.s32 %s279, %s280
          %s282 = smul.addr %s281, 8
          %s283 = scalar_lea.vmem %s1, %s282
          // Predicated region
          $region71: #{tpu_custom_call.1} parent=69 // pred_check
            _
          $region72: #{tpu_custom_call.1} parent=69 // pred_check_branch
            %285 = sbr.rel (0) target = $region74
          $region73: #{tpu_custom_call.1} parent=69 // pred_region
            // Predicated region
            $region75: #{tpu_custom_call.1} parent=73 // pred_check
              _
            $region76: #{tpu_custom_call.1} parent=73 // pred_check_branch
              %287 = sbr.rel (0) target = $region78
            $region77: #{tpu_custom_call.1} parent=73 // pred_region
              // Predicated region
              $region90: #{tpu_custom_call.1} parent=77 // pred_check
                _
              $region91: #{tpu_custom_call.1} parent=77 // pred_check_branch
                %317 = sbr.rel (0) target = $region93
              $region92: #{tpu_custom_call.1} parent=77 // pred_region
                loop: start=0, step=1, limit=1
                $region94: #{tpu_custom_call.1} parent=92 // loop_pre_header
                  _
                $region95: #{tpu_custom_call.1} parent=92 // loop_header
                  %s319 = sphi 0, %s323
                  %p320 = scmp.ge.s32.totalorder %s319, 1
                  %s324 = sphi %s283, %s283
                  %s325 = sphi %s277, %s277
                $region96: #{tpu_custom_call.1} parent=92 // loop_header_branch
                  %322 = sbr.rel (%p320) target = $region100
                $region97: #{tpu_custom_call.1} parent=92 // loop_body
                  %v326 = vld [vmem:[%s324] sm:$0xff]
                  %327 = vst [vmem:[%s325] sm:$0xff] %v326
                  %v328 = vld [vmem:[%s324 + $0x10] sm:$0xff]
                  %329 = vst [vmem:[%s325 + $0x8] sm:$0xff] %v328
                  %v330 = vld [vmem:[%s324 + $0x20] sm:$0xff]
                  %331 = vst [vmem:[%s325 + $0x10] sm:$0xff] %v330
                  %v332 = vld [vmem:[%s324 + $0x30] sm:$0xff]
                  %333 = vst [vmem:[%s325 + $0x18] sm:$0xff] %v332
                  %v334 = vld [vmem:[%s324 + $0x40] sm:$0xff]
                  %335 = vst [vmem:[%s325 + $0x20] sm:$0xff] %v334
                  %v336 = vld [vmem:[%s324 + $0x50] sm:$0xff]
                  %337 = vst [vmem:[%s325 + $0x28] sm:$0xff] %v336
                  %v338 = vld [vmem:[%s324 + $0x60] sm:$0xff]
                  %339 = vst [vmem:[%s325 + $0x30] sm:$0xff] %v338
                  %v340 = vld [vmem:[%s324 + $0x70] sm:$0xff]
                  %341 = vst [vmem:[%s325 + $0x38] sm:$0xff] %v340
                $region98: #{tpu_custom_call.1} parent=92 // loop_footer
                  %s323 = sadd.s32 1, %s319
                $region99: #{tpu_custom_call.1} parent=92 // loop_footer_branch
                  %318 = sbr.rel target = $region95
                $region100: #{tpu_custom_call.1} parent=92 // loop_exit
                  _
              $region93: #{tpu_custom_call.1} parent=77 // pred_fallthru
                _
              // Predicated region
              $region101: #{tpu_custom_call.1} parent=77 // pred_check
                _
              $region102: #{tpu_custom_call.1} parent=77 // pred_check_branch
                %343 = sbr.rel target = $region104
              $region103: #{tpu_custom_call.1} parent=77 // pred_region
                _
              $region104: #{tpu_custom_call.1} parent=77 // pred_fallthru
                _
            $region78: #{tpu_custom_call.1} parent=73 // pred_fallthru
              _
            // Predicated region
            $region79: #{tpu_custom_call.1} parent=73 // pred_check
              _
            $region80: #{tpu_custom_call.1} parent=73 // pred_check_branch
              %289 = sbr.rel target = $region82
            $region81: #{tpu_custom_call.1} parent=73 // pred_region
              %s291 = ssub.s32 256, 1
              loop: start=0, step=1, limit=1
              $region83: #{tpu_custom_call.1} parent=81 // loop_pre_header
                _
              $region84: #{tpu_custom_call.1} parent=81 // loop_header
                %s293 = sphi 0, %s297
                %p294 = scmp.ge.s32.totalorder %s293, 1
                %s298 = sphi %s283, %s283
                %s299 = sphi %s277, %s277
              $region85: #{tpu_custom_call.1} parent=81 // loop_header_branch
                %296 = sbr.rel (%p294) target = $region89
              $region86: #{tpu_custom_call.1} parent=81 // loop_body
                %v300 = vld [vmem:[%s298] sm:%s291]
                %301 = vst [vmem:[%s299] sm:%s291] %v300
                %v302 = vld [vmem:[%s298 + $0x10] sm:%s291]
                %303 = vst [vmem:[%s299 + $0x8] sm:%s291] %v302
                %v304 = vld [vmem:[%s298 + $0x20] sm:%s291]
                %305 = vst [vmem:[%s299 + $0x10] sm:%s291] %v304
                %v306 = vld [vmem:[%s298 + $0x30] sm:%s291]
                %307 = vst [vmem:[%s299 + $0x18] sm:%s291] %v306
                %v308 = vld [vmem:[%s298 + $0x40] sm:%s291]
                %309 = vst [vmem:[%s299 + $0x20] sm:%s291] %v308
                %v310 = vld [vmem:[%s298 + $0x50] sm:%s291]
                %311 = vst [vmem:[%s299 + $0x28] sm:%s291] %v310
                %v312 = vld [vmem:[%s298 + $0x60] sm:%s291]
                %313 = vst [vmem:[%s299 + $0x30] sm:%s291] %v312
                %v314 = vld [vmem:[%s298 + $0x70] sm:%s291]
                %315 = vst [vmem:[%s299 + $0x38] sm:%s291] %v314
              $region87: #{tpu_custom_call.1} parent=81 // loop_footer
                %s297 = sadd.s32 1, %s293
              $region88: #{tpu_custom_call.1} parent=81 // loop_footer_branch
                %292 = sbr.rel target = $region84
              $region89: #{tpu_custom_call.1} parent=81 // loop_exit
                _
            $region82: #{tpu_custom_call.1} parent=73 // pred_fallthru
              _
          $region74: #{tpu_custom_call.1} parent=69 // pred_fallthru
            _
          %344 = vnop
        $region70: #{tpu_custom_call.1} parent=27 // pred_fallthru
          _
      $region28: #{tpu_custom_call.1} parent=5 // pred_fallthru
        _
      %p345 = scmp.le.s32.totalorder 1, %s11
      %p346 = scmp.lt.s32.totalorder %s11, 3
      %p347 = pnand %p345, %p346
      %p348 = pneg %p347
      // Predicated region
      $region105: #{tpu_custom_call.1} parent=5 // pred_check
        _
      $region106: #{tpu_custom_call.1} parent=5 // pred_check_branch
        %350 = sbr.rel (%p347) target = $region108
      $region107: #{tpu_custom_call.1} parent=5 // pred_region
        %s351 = ssub.s32 %s11, 1
        %s352 = sand.u32 %s38, 1
        %s353 = sand.u32 %s38, 1
        %s354 = smul.addr %s353, 64
        %s355 = scalar_lea.vmem [#allocation2], %s354
        // Predicated region
        $region109: #{tpu_custom_call.1} parent=107 // pred_check
          %p356 = pneg %p51
        $region110: #{tpu_custom_call.1} parent=107 // pred_check_branch
          %358 = sbr.rel (%p356) target = $region112
        $region111: #{tpu_custom_call.1} parent=107 // pred_region
          _
        $region112: #{tpu_custom_call.1} parent=107 // pred_fallthru
          _
        %s359 = sand.u32 %s66, 1
        %s360 = sand.u32 %s66, 1
        %s361 = smul.addr %s360, 64
        %s362 = scalar_lea.vmem [#allocation3], %s361
        // Predicated region
        $region113: #{tpu_custom_call.1} parent=107 // pred_check
          %p363 = pneg %p79
        $region114: #{tpu_custom_call.1} parent=107 // pred_check_branch
          %365 = sbr.rel (%p363) target = $region116
        $region115: #{tpu_custom_call.1} parent=107 // pred_region
          _
        $region116: #{tpu_custom_call.1} parent=107 // pred_fallthru
          _
        %s366 = sand.u32 %s38, 1
        %s367 = sand.u32 %s38, 1
        %s368 = smul.addr %s367, 64
        %s369 = scalar_lea.vmem [#allocation2], %s368
        %p370 = pneg %p51
        %p371 = pneg %p48
        %s372 = sand.u32 %s66, 1
        %s373 = sand.u32 %s66, 1
        %s374 = smul.addr %s373, 64
        %s375 = scalar_lea.vmem [#allocation3], %s374
        %p376 = pneg %p79
        %p377 = pneg %p76
        %p378 = pneg %p100
        %p379 = pneg %p97
        %p380 = pneg %p121
        %p381 = pneg %p118
        %p382 = pneg %p142
        %p383 = pneg %p139
        %p384 = pneg %p170
        %p385 = pneg %p167
        %s386 = smul.u32 8, %s20
        %p387 = scmp.lt.s32.totalorder %s386, 15
        %s388 = scalar_select %p387, %s386, 15
        %p389 = scmp.lt.s32.totalorder %s21, 0
        %s390 = scalar_select %p389, %s21, 0
        %s391 = sadd.s32 %s390, %s388
        %s392 = smul.addr %s391, 8
        %s393 = scalar_lea.vmem %s5, %s392
        %s394 = smul.u32 8, %s20
        %s395 = smul.u32 8, %s20
        %s396 = smul.u32 8, %s20
        %p397 = scmp.lt.s32.totalorder %s396, 15
        %s398 = scalar_select %p397, %s396, 15
        %p399 = scmp.lt.s32.totalorder %s21, 0
        %s400 = scalar_select %p399, %s21, 0
        %s401 = sadd.s32 %s400, %s398
        %s402 = smul.addr %s401, 8
        %s403 = scalar_lea.vmem %s5, %s402
        %s404 = smul.u32 8, %s20
        %v405 = vld [vmem:[%s355] sm:$0xff]
        %v406 = vld [vmem:[%s355 + $0x8] sm:$0xff]
        %v407 = vld [vmem:[%s355 + $0x10] sm:$0xff]
        %v408 = vld [vmem:[%s355 + $0x18] sm:$0xff]
        %v409 = vld [vmem:[%s355 + $0x20] sm:$0xff]
        %v410 = vld [vmem:[%s355 + $0x28] sm:$0xff]
        %v411 = vld [vmem:[%s355 + $0x30] sm:$0xff]
        %v412 = vld [vmem:[%s355 + $0x38] sm:$0xff]
        %v413 = vld [vmem:[%s362] sm:$0xff]
        %v414 = vld [vmem:[%s362 + $0x8] sm:$0xff]
        %v415 = vld [vmem:[%s362 + $0x10] sm:$0xff]
        %v416 = vld [vmem:[%s362 + $0x18] sm:$0xff]
        %v417 = vld [vmem:[%s362 + $0x20] sm:$0xff]
        %v418 = vld [vmem:[%s362 + $0x28] sm:$0xff]
        %v419 = vld [vmem:[%s362 + $0x30] sm:$0xff]
        %v420 = vld [vmem:[%s362 + $0x38] sm:$0xff]
        %vm421 = vcmask 64512
        %v422 = vsel %vm421, %v405, 0.0
        %423 = vadd.xlane.f32.xlu0 %v422
        %v424 = vpop.xlane.xlu0 %423
        %v425 = vsel %vm421, %v406, 0.0
        %426 = vadd.xlane.f32.xlu0 %v425
        %v427 = vpop.xlane.xlu0 %426
        %v428 = vsel %vm421, %v407, 0.0
        %429 = vadd.xlane.f32.xlu0 %v428
        %v430 = vpop.xlane.xlu0 %429
        %v431 = vsel %vm421, %v408, 0.0
        %432 = vadd.xlane.f32.xlu0 %v431
        %v433 = vpop.xlane.xlu0 %432
        %v434 = vsel %vm421, %v409, 0.0
        %435 = vadd.xlane.f32.xlu0 %v434
        %v436 = vpop.xlane.xlu0 %435
        %v437 = vsel %vm421, %v410, 0.0
        %438 = vadd.xlane.f32.xlu0 %v437
        %v439 = vpop.xlane.xlu0 %438
        %v440 = vsel %vm421, %v411, 0.0
        %441 = vadd.xlane.f32.xlu0 %v440
        %v442 = vpop.xlane.xlu0 %441
        %v443 = vsel %vm421, %v412, 0.0
        %444 = vadd.xlane.f32.xlu0 %v443
        %v445 = vpop.xlane.xlu0 %444
        %v446 = vsel %vm421, %v413, 0.0
        %447 = vadd.xlane.f32.xlu0 %v446
        %v448 = vpop.xlane.xlu0 %447
        %v449 = vsel %vm421, %v414, 0.0
        %450 = vadd.xlane.f32.xlu0 %v449
        %v451 = vpop.xlane.xlu0 %450
        %v452 = vsel %vm421, %v415, 0.0
        %453 = vadd.xlane.f32.xlu0 %v452
        %v454 = vpop.xlane.xlu0 %453
        %v455 = vsel %vm421, %v416, 0.0
        %456 = vadd.xlane.f32.xlu0 %v455
        %v457 = vpop.xlane.xlu0 %456
        %v458 = vsel %vm421, %v417, 0.0
        %459 = vadd.xlane.f32.xlu0 %v458
        %v460 = vpop.xlane.xlu0 %459
        %v461 = vsel %vm421, %v418, 0.0
        %462 = vadd.xlane.f32.xlu0 %v461
        %v463 = vpop.xlane.xlu0 %462
        %v464 = vsel %vm421, %v419, 0.0
        %465 = vadd.xlane.f32.xlu0 %v464
        %v466 = vpop.xlane.xlu0 %465
        %v467 = vsel %vm421, %v420, 0.0
        %468 = vadd.xlane.f32.xlu0 %v467
        %v469 = vpop.xlane.xlu0 %468
        %v470 = vadd.f32 %v424, %v448
        %v471 = vadd.f32 %v427, %v451
        %v472 = vadd.f32 %v430, %v454
        %v473 = vadd.f32 %v433, %v457
        %v474 = vadd.f32 %v436, %v460
        %v475 = vadd.f32 %v439, %v463
        %v476 = vadd.f32 %v442, %v466
        %v477 = vadd.f32 %v445, %v469
        %v478 = vmul.f32 %v405, %v405
        %v479 = vmul.f32 %v406, %v406
        %v480 = vmul.f32 %v407, %v407
        %v481 = vmul.f32 %v408, %v408
        %v482 = vmul.f32 %v409, %v409
        %v483 = vmul.f32 %v410, %v410
        %v484 = vmul.f32 %v411, %v411
        %v485 = vmul.f32 %v412, %v412
        %v486 = vsel %vm421, %v478, 0.0
        %487 = vadd.xlane.f32.xlu0 %v486
        %v488 = vpop.xlane.xlu0 %487
        %v489 = vsel %vm421, %v479, 0.0
        %490 = vadd.xlane.f32.xlu0 %v489
        %v491 = vpop.xlane.xlu0 %490
        %v492 = vsel %vm421, %v480, 0.0
        %493 = vadd.xlane.f32.xlu0 %v492
        %v494 = vpop.xlane.xlu0 %493
        %v495 = vsel %vm421, %v481, 0.0
        %496 = vadd.xlane.f32.xlu0 %v495
        %v497 = vpop.xlane.xlu0 %496
        %v498 = vsel %vm421, %v482, 0.0
        %499 = vadd.xlane.f32.xlu0 %v498
        %v500 = vpop.xlane.xlu0 %499
        %v501 = vsel %vm421, %v483, 0.0
        %502 = vadd.xlane.f32.xlu0 %v501
        %v503 = vpop.xlane.xlu0 %502
        %v504 = vsel %vm421, %v484, 0.0
        %505 = vadd.xlane.f32.xlu0 %v504
        %v506 = vpop.xlane.xlu0 %505
        %v507 = vsel %vm421, %v485, 0.0
        %508 = vadd.xlane.f32.xlu0 %v507
        %v509 = vpop.xlane.xlu0 %508
        %v510 = vmul.f32 %v413, %v413
        %v511 = vmul.f32 %v414, %v414
        %v512 = vmul.f32 %v415, %v415
        %v513 = vmul.f32 %v416, %v416
        %v514 = vmul.f32 %v417, %v417
        %v515 = vmul.f32 %v418, %v418
        %v516 = vmul.f32 %v419, %v419
        %v517 = vmul.f32 %v420, %v420
        %v518 = vsel %vm421, %v510, 0.0
        %519 = vadd.xlane.f32.xlu0 %v518
        %v520 = vpop.xlane.xlu0 %519
        %v521 = vsel %vm421, %v511, 0.0
        %522 = vadd.xlane.f32.xlu0 %v521
        %v523 = vpop.xlane.xlu0 %522
        %v524 = vsel %vm421, %v512, 0.0
        %525 = vadd.xlane.f32.xlu0 %v524
        %v526 = vpop.xlane.xlu0 %525
        %v527 = vsel %vm421, %v513, 0.0
        %528 = vadd.xlane.f32.xlu0 %v527
        %v529 = vpop.xlane.xlu0 %528
        %v530 = vsel %vm421, %v514, 0.0
        %531 = vadd.xlane.f32.xlu0 %v530
        %v532 = vpop.xlane.xlu0 %531
        %v533 = vsel %vm421, %v515, 0.0
        %534 = vadd.xlane.f32.xlu0 %v533
        %v535 = vpop.xlane.xlu0 %534
        %v536 = vsel %vm421, %v516, 0.0
        %537 = vadd.xlane.f32.xlu0 %v536
        %v538 = vpop.xlane.xlu0 %537
        %v539 = vsel %vm421, %v517, 0.0
        %540 = vadd.xlane.f32.xlu0 %v539
        %v541 = vpop.xlane.xlu0 %540
        %v542 = vadd.f32 %v488, %v520
        %v543 = vadd.f32 %v491, %v523
        %v544 = vadd.f32 %v494, %v526
        %v545 = vadd.f32 %v497, %v529
        %v546 = vadd.f32 %v500, %v532
        %v547 = vadd.f32 %v503, %v535
        %v548 = vadd.f32 %v506, %v538
        %v549 = vadd.f32 %v509, %v541
        %v550 = vmul.f32 %v470, 0.0625
        %v551 = vmul.f32 %v471, 0.0625
        %v552 = vmul.f32 %v472, 0.0625
        %v553 = vmul.f32 %v473, 0.0625
        %v554 = vmul.f32 %v474, 0.0625
        %v555 = vmul.f32 %v475, 0.0625
        %v556 = vmul.f32 %v476, 0.0625
        %v557 = vmul.f32 %v477, 0.0625
        %v558 = vmul.f32 %v542, 0.0625
        %v559 = vmul.f32 %v543, 0.0625
        %v560 = vmul.f32 %v544, 0.0625
        %v561 = vmul.f32 %v545, 0.0625
        %v562 = vmul.f32 %v546, 0.0625
        %v563 = vmul.f32 %v547, 0.0625
        %v564 = vmul.f32 %v548, 0.0625
        %v565 = vmul.f32 %v549, 0.0625
        %v566 = vmul.f32 %v550, %v550
        %v567 = vmul.f32 %v551, %v551
        %v568 = vmul.f32 %v552, %v552
        %v569 = vmul.f32 %v553, %v553
        %v570 = vmul.f32 %v554, %v554
        %v571 = vmul.f32 %v555, %v555
        %v572 = vmul.f32 %v556, %v556
        %v573 = vmul.f32 %v557, %v557
        %v574 = vsub.f32 %v558, %v566
        %v575 = vsub.f32 %v559, %v567
        %v576 = vsub.f32 %v560, %v568
        %v577 = vsub.f32 %v561, %v569
        %v578 = vsub.f32 %v562, %v570
        %v579 = vsub.f32 %v563, %v571
        %v580 = vsub.f32 %v564, %v572
        %v581 = vsub.f32 %v565, %v573
        %v582 = vadd.f32 %v574, 1e-05
        %v583 = vadd.f32 %v575, 1e-05
        %v584 = vadd.f32 %v576, 1e-05
        %v585 = vadd.f32 %v577, 1e-05
        %v586 = vadd.f32 %v578, 1e-05
        %v587 = vadd.f32 %v579, 1e-05
        %v588 = vadd.f32 %v580, 1e-05
        %v589 = vadd.f32 %v581, 1e-05
        %v590 = vrsqrt.pop %v582
        %v591 = vrsqrt.pop %v583
        %v592 = vrsqrt.pop %v584
        %v593 = vrsqrt.pop %v585
        %v594 = vrsqrt.pop %v586
        %v595 = vrsqrt.pop %v587
        %v596 = vrsqrt.pop %v588
        %v597 = vrsqrt.pop %v589
        %v598 = vsub.f32 %v405, %v550
        %v599 = vsub.f32 %v406, %v551
        %v600 = vsub.f32 %v407, %v552
        %v601 = vsub.f32 %v408, %v553
        %v602 = vsub.f32 %v409, %v554
        %v603 = vsub.f32 %v410, %v555
        %v604 = vsub.f32 %v411, %v556
        %v605 = vsub.f32 %v412, %v557
        %v606 = vmul.f32 %v598, %v590
        %v607 = vmul.f32 %v599, %v591
        %v608 = vmul.f32 %v600, %v592
        %v609 = vmul.f32 %v601, %v593
        %v610 = vmul.f32 %v602, %v594
        %v611 = vmul.f32 %v603, %v595
        %v612 = vmul.f32 %v604, %v596
        %v613 = vmul.f32 %v605, %v597
        %v614 = vsub.f32 %v413, %v550
        %v615 = vsub.f32 %v414, %v551
        %v616 = vsub.f32 %v415, %v552
        %v617 = vsub.f32 %v416, %v553
        %v618 = vsub.f32 %v417, %v554
        %v619 = vsub.f32 %v418, %v555
        %v620 = vsub.f32 %v419, %v556
        %v621 = vsub.f32 %v420, %v557
        %v622 = vmul.f32 %v614, %v590
        %v623 = vmul.f32 %v615, %v591
        %v624 = vmul.f32 %v616, %v592
        %v625 = vmul.f32 %v617, %v593
        %v626 = vmul.f32 %v618, %v594
        %v627 = vmul.f32 %v619, %v595
        %v628 = vmul.f32 %v620, %v596
        %v629 = vmul.f32 %v621, %v597
        %v630 = vld [vmem:[%s2] sm:$0xff]
        %v631 = vld [vmem:[%s3] sm:$0xff]
        %v633 = vsel %vm421, %v622, 0
        %v636 = vsel %vm421, %v623, 0
        %v639 = vsel %vm421, %v624, 0
        %v642 = vsel %vm421, %v625, 0
        %v645 = vsel %vm421, %v626, 0
        %v648 = vsel %vm421, %v627, 0
        %v651 = vsel %vm421, %v628, 0
        %v654 = vsel %vm421, %v629, 0
        %656 = vmatprep.subr.mxu0 0.0
        %657 = vmatpush1.msra.mxu0 0.0
        %658 = vmatprep.subr.mxu0 0.0
        %659 = vmatpush1.msra.mxu0 0.0
        %660 = vmatprep.subr.mxu0 0.0
        %661 = vmatpush1.msra.mxu0 0.0
        %662 = vmatprep.subr.mxu0 0.0
        %663 = vmatpush1.msra.mxu0 0.0
        %664 = vmatprep.subr.mxu0 0.0
        %665 = vmatpush1.msra.mxu0 0.0
        %666 = vmatprep.subr.mxu0 0.0
        %667 = vmatpush1.msra.mxu0 0.0
        %668 = vmatprep.subr.mxu0 0.0
        %669 = vmatpush1.msra.mxu0 0.0
        %670 = vmatprep.subr.mxu0 0.0
        %671 = vmatpush1.msra.mxu0 0.0
        %672 = vmatprep.subr.mxu0 0.0
        %673 = vmatpush1.msra.mxu0 0.0
        %674 = vmatprep.subr.mxu0 0.0
        %675 = vmatpush1.msra.mxu0 0.0
        %676 = vmatprep.subr.mxu0 0.0
        %677 = vmatpush1.msra.mxu0 0.0
        %678 = vmatprep.subr.mxu0 0.0
        %679 = vmatpush1.msra.mxu0 0.0
        %680 = vmatprep.subr.mxu0 0.0
        %681 = vmatpush1.msra.mxu0 0.0
        %682 = vmatprep.subr.mxu0 0.0
        %683 = vmatpush1.msra.mxu0 0.0
        %684 = vmatprep.subr.mxu0 0.0
        %685 = vmatpush1.msra.mxu0 0.0
        %686 = vmatprep.subr.mxu0 0.0
        %687 = vmatpush1.msra.mxu0 %v631
        %688 = vmatprep.subr.mxu0 0.0
        %689 = vmatpush2.msra.mxu0 0.0
        %690 = vmatprep.subr.mxu0 0.0
        %691 = vmatpush2.msra.mxu0 0.0
        %692 = vmatprep.subr.mxu0 0.0
        %693 = vmatpush2.msra.mxu0 0.0
        %694 = vmatprep.subr.mxu0 0.0
        %695 = vmatpush2.msra.mxu0 0.0
        %696 = vmatprep.subr.mxu0 0.0
        %697 = vmatpush2.msra.mxu0 0.0
        %698 = vmatprep.subr.mxu0 0.0
        %699 = vmatpush2.msra.mxu0 0.0
        %700 = vmatprep.subr.mxu0 0.0
        %701 = vmatpush2.msra.mxu0 0.0
        %702 = vmatprep.subr.mxu0 0.0
        %703 = vmatpush2.msra.mxu0 0.0
        %704 = vmatprep.subr.mxu0 0.0
        %705 = vmatpush2.msra.mxu0 0.0
        %706 = vmatprep.subr.mxu0 0.0
        %707 = vmatpush2.msra.mxu0 0.0
        %708 = vmatprep.subr.mxu0 0.0
        %709 = vmatpush2.msra.mxu0 0.0
        %710 = vmatprep.subr.mxu0 0.0
        %711 = vmatpush2.msra.mxu0 0.0
        %712 = vmatprep.subr.mxu0 0.0
        %713 = vmatpush2.msra.mxu0 0.0
        %714 = vmatprep.subr.mxu0 0.0
        %715 = vmatpush2.msra.mxu0 0.0
        %716 = vmatprep.subr.mxu0 0.0
        %717 = vmatpush2.msra.mxu0 0.0
        %718 = vmatprep.subr.mxu0 0.0
        %719 = vmatpush2.msra.mxu0 0.0
        %720 = vmatprep.mubr.f32.mxu0 0.0
        %721 = vmatmul.mubr.f32.gmra.mxu0 %v633
        %v722 = vpop.f32.mrf.mxu0
        %v723 = vadd.f32 0.0, %v722
        %v724 = vpop.f32.mrf.mxu0
        %725 = vmatprep.mubr.f32.mxu0 0.0
        %726 = vmatmul.mubr.f32.gmra.mxu0 %v636
        %v727 = vpop.f32.mrf.mxu0
        %v728 = vadd.f32 0.0, %v727
        %v729 = vpop.f32.mrf.mxu0
        %730 = vmatprep.mubr.f32.mxu0 0.0
        %731 = vmatmul.mubr.f32.gmra.mxu0 %v639
        %v732 = vpop.f32.mrf.mxu0
        %v733 = vadd.f32 0.0, %v732
        %v734 = vpop.f32.mrf.mxu0
        %735 = vmatprep.mubr.f32.mxu0 0.0
        %736 = vmatmul.mubr.f32.gmra.mxu0 %v642
        %v737 = vpop.f32.mrf.mxu0
        %v738 = vadd.f32 0.0, %v737
        %v739 = vpop.f32.mrf.mxu0
        %740 = vmatprep.mubr.f32.mxu0 0.0
        %741 = vmatmul.mubr.f32.gmra.mxu0 %v645
        %v742 = vpop.f32.mrf.mxu0
        %v743 = vadd.f32 0.0, %v742
        %v744 = vpop.f32.mrf.mxu0
        %745 = vmatprep.mubr.f32.mxu0 0.0
        %746 = vmatmul.mubr.f32.gmra.mxu0 %v648
        %v747 = vpop.f32.mrf.mxu0
        %v748 = vadd.f32 0.0, %v747
        %v749 = vpop.f32.mrf.mxu0
        %750 = vmatprep.mubr.f32.mxu0 0.0
        %751 = vmatmul.mubr.f32.gmra.mxu0 %v651
        %v752 = vpop.f32.mrf.mxu0
        %v753 = vadd.f32 0.0, %v752
        %v754 = vpop.f32.mrf.mxu0
        %755 = vmatprep.mubr.f32.mxu0 0.0
        %756 = vmatmul.mubr.f32.gmra.mxu0 %v654
        %v757 = vpop.f32.mrf.mxu0
        %v758 = vadd.f32 0.0, %v757
        %v759 = vpop.f32.mrf.mxu0
        %760 = vdwg.mxu0
        %v762 = vsel %vm421, %v606, 0
        %v765 = vsel %vm421, %v607, 0
        %v768 = vsel %vm421, %v608, 0
        %v771 = vsel %vm421, %v609, 0
        %v774 = vsel %vm421, %v610, 0
        %v777 = vsel %vm421, %v611, 0
        %v780 = vsel %vm421, %v612, 0
        %v783 = vsel %vm421, %v613, 0
        %785 = vmatprep.subr.mxu0 0.0
        %786 = vmatpush1.msra.mxu0 0.0
        %787 = vmatprep.subr.mxu0 0.0
        %788 = vmatpush1.msra.mxu0 0.0
        %789 = vmatprep.subr.mxu0 0.0
        %790 = vmatpush1.msra.mxu0 0.0
        %791 = vmatprep.subr.mxu0 0.0
        %792 = vmatpush1.msra.mxu0 0.0
        %793 = vmatprep.subr.mxu0 0.0
        %794 = vmatpush1.msra.mxu0 0.0
        %795 = vmatprep.subr.mxu0 0.0
        %796 = vmatpush1.msra.mxu0 0.0
        %797 = vmatprep.subr.mxu0 0.0
        %798 = vmatpush1.msra.mxu0 0.0
        %799 = vmatprep.subr.mxu0 0.0
        %800 = vmatpush1.msra.mxu0 0.0
        %801 = vmatprep.subr.mxu0 0.0
        %802 = vmatpush1.msra.mxu0 0.0
        %803 = vmatprep.subr.mxu0 0.0
        %804 = vmatpush1.msra.mxu0 0.0
        %805 = vmatprep.subr.mxu0 0.0
        %806 = vmatpush1.msra.mxu0 0.0
        %807 = vmatprep.subr.mxu0 0.0
        %808 = vmatpush1.msra.mxu0 0.0
        %809 = vmatprep.subr.mxu0 0.0
        %810 = vmatpush1.msra.mxu0 0.0
        %811 = vmatprep.subr.mxu0 0.0
        %812 = vmatpush1.msra.mxu0 0.0
        %813 = vmatprep.subr.mxu0 0.0
        %814 = vmatpush1.msra.mxu0 0.0
        %815 = vmatprep.subr.mxu0 0.0
        %816 = vmatpush1.msra.mxu0 %v630
        %817 = vmatprep.subr.mxu0 0.0
        %818 = vmatpush2.msra.mxu0 0.0
        %819 = vmatprep.subr.mxu0 0.0
        %820 = vmatpush2.msra.mxu0 0.0
        %821 = vmatprep.subr.mxu0 0.0
        %822 = vmatpush2.msra.mxu0 0.0
        %823 = vmatprep.subr.mxu0 0.0
        %824 = vmatpush2.msra.mxu0 0.0
        %825 = vmatprep.subr.mxu0 0.0
        %826 = vmatpush2.msra.mxu0 0.0
        %827 = vmatprep.subr.mxu0 0.0
        %828 = vmatpush2.msra.mxu0 0.0
        %829 = vmatprep.subr.mxu0 0.0
        %830 = vmatpush2.msra.mxu0 0.0
        %831 = vmatprep.subr.mxu0 0.0
        %832 = vmatpush2.msra.mxu0 0.0
        %833 = vmatprep.subr.mxu0 0.0
        %834 = vmatpush2.msra.mxu0 0.0
        %835 = vmatprep.subr.mxu0 0.0
        %836 = vmatpush2.msra.mxu0 0.0
        %837 = vmatprep.subr.mxu0 0.0
        %838 = vmatpush2.msra.mxu0 0.0
        %839 = vmatprep.subr.mxu0 0.0
        %840 = vmatpush2.msra.mxu0 0.0
        %841 = vmatprep.subr.mxu0 0.0
        %842 = vmatpush2.msra.mxu0 0.0
        %843 = vmatprep.subr.mxu0 0.0
        %844 = vmatpush2.msra.mxu0 0.0
        %845 = vmatprep.subr.mxu0 0.0
        %846 = vmatpush2.msra.mxu0 0.0
        %847 = vmatprep.subr.mxu0 0.0
        %848 = vmatpush2.msra.mxu0 0.0
        %849 = vmatprep.mubr.f32.mxu0 0.0
        %850 = vmatmul.mubr.f32.gmra.mxu0 %v762
        %v851 = vpop.f32.mrf.mxu0
        %v852 = vadd.f32 %v723, %v851
        %v853 = vpop.f32.mrf.mxu0
        %854 = vmatprep.mubr.f32.mxu0 0.0
        %855 = vmatmul.mubr.f32.gmra.mxu0 %v765
        %v856 = vpop.f32.mrf.mxu0
        %v857 = vadd.f32 %v728, %v856
        %v858 = vpop.f32.mrf.mxu0
        %859 = vmatprep.mubr.f32.mxu0 0.0
        %860 = vmatmul.mubr.f32.gmra.mxu0 %v768
        %v861 = vpop.f32.mrf.mxu0
        %v862 = vadd.f32 %v733, %v861
        %v863 = vpop.f32.mrf.mxu0
        %864 = vmatprep.mubr.f32.mxu0 0.0
        %865 = vmatmul.mubr.f32.gmra.mxu0 %v771
        %v866 = vpop.f32.mrf.mxu0
        %v867 = vadd.f32 %v738, %v866
        %v868 = vpop.f32.mrf.mxu0
        %869 = vmatprep.mubr.f32.mxu0 0.0
        %870 = vmatmul.mubr.f32.gmra.mxu0 %v774
        %v871 = vpop.f32.mrf.mxu0
        %v872 = vadd.f32 %v743, %v871
        %v873 = vpop.f32.mrf.mxu0
        %874 = vmatprep.mubr.f32.mxu0 0.0
        %875 = vmatmul.mubr.f32.gmra.mxu0 %v777
        %v876 = vpop.f32.mrf.mxu0
        %v877 = vadd.f32 %v748, %v876
        %v878 = vpop.f32.mrf.mxu0
        %879 = vmatprep.mubr.f32.mxu0 0.0
        %880 = vmatmul.mubr.f32.gmra.mxu0 %v780
        %v881 = vpop.f32.mrf.mxu0
        %v882 = vadd.f32 %v753, %v881
        %v883 = vpop.f32.mrf.mxu0
        %884 = vmatprep.mubr.f32.mxu0 0.0
        %885 = vmatmul.mubr.f32.gmra.mxu0 %v783
        %v886 = vpop.f32.mrf.mxu0
        %v887 = vadd.f32 %v758, %v886
        %v888 = vpop.f32.mrf.mxu0
        %889 = vdwg.mxu0
        %v890 = vld [vmem:[%s4] sm:$0x1]
        %v892 = vlaneseq
        %v893 = vshrl.u32 %v892, 7
        %v894 = vsub.s32 0, %v893
        %v895 = vrot.slane %v890, %v894
        %v897 = vadd.f32 %v852, %v895
        %v898 = vadd.f32 %v857, %v895
        %v899 = vadd.f32 %v862, %v895
        %v900 = vadd.f32 %v867, %v895
        %v901 = vadd.f32 %v872, %v895
        %v902 = vadd.f32 %v877, %v895
        %v903 = vadd.f32 %v882, %v895
        %v904 = vadd.f32 %v887, %v895
        %905 = vst.msk [vmem:[%s403] sm:$0xff] %vm421, %v897
        %906 = vst.msk [vmem:[%s403 + $0x8] sm:$0xff] %vm421, %v898
        %907 = vst.msk [vmem:[%s403 + $0x10] sm:$0xff] %vm421, %v899
        %908 = vst.msk [vmem:[%s403 + $0x18] sm:$0xff] %vm421, %v900
        %909 = vst.msk [vmem:[%s403 + $0x20] sm:$0xff] %vm421, %v901
        %910 = vst.msk [vmem:[%s403 + $0x28] sm:$0xff] %vm421, %v902
        %911 = vst.msk [vmem:[%s403 + $0x30] sm:$0xff] %vm421, %v903
        %912 = vst.msk [vmem:[%s403 + $0x38] sm:$0xff] %vm421, %v904
        %s913 = smul.u32 8, %s20
        %p914 = scmp.lt.s32.totalorder %s913, 15
        %s915 = scalar_select %p914, %s913, 15
        %p916 = scmp.lt.s32.totalorder %s21, 0
        %s917 = scalar_select %p916, %s21, 0
        %s918 = sadd.s32 %s917, %s915
        %s919 = smul.addr %s918, 8
        %s920 = scalar_lea.vmem %s5, %s919
        // Predicated region
        $region117: #{tpu_custom_call.1} parent=107 // pred_check
          %p921 = pneg %p167
        $region118: #{tpu_custom_call.1} parent=107 // pred_check_branch
          %923 = sbr.rel (%p921) target = $region120
        $region119: #{tpu_custom_call.1} parent=107 // pred_region
          %s924 = smul.u32 8, %s20
        $region120: #{tpu_custom_call.1} parent=107 // pred_fallthru
          _
      $region108: #{tpu_custom_call.1} parent=5 // pred_fallthru
        _
      %p925 = scmp.le.s32.totalorder 2, %s11
      // Predicated region
      $region121: #{tpu_custom_call.1} parent=5 // pred_check
        %p926 = pneg %p925
      $region122: #{tpu_custom_call.1} parent=5 // pred_check_branch
        %928 = sbr.rel (%p926) target = $region124
      $region123: #{tpu_custom_call.1} parent=5 // pred_region
        %s929 = ssub.s32 %s11, 2
        // Predicated region
        $region125: #{tpu_custom_call.1} parent=123 // pred_check
          %p930 = pneg %p173
        $region126: #{tpu_custom_call.1} parent=123 // pred_check_branch
          %932 = sbr.rel (%p930) target = $region128
        $region127: #{tpu_custom_call.1} parent=123 // pred_region
          %s933 = smul.u32 8, %s22
          %p934 = scmp.lt.s32.totalorder %s933, 15
          %s935 = scalar_select %p934, %s933, 15
          %p936 = scmp.lt.s32.totalorder %s23, 0
          %s937 = scalar_select %p936, %s23, 0
          %s938 = sadd.s32 %s937, %s935
          %s939 = smul.addr %s938, 8
          %s940 = scalar_lea.vmem %s5, %s939
        $region128: #{tpu_custom_call.1} parent=123 // pred_fallthru
          _
      $region124: #{tpu_custom_call.1} parent=5 // pred_fallthru
        _
    $region6: #{tpu_custom_call.1} parent=1 // loop_footer
      %s15 = sadd.s32 1, %s11
    $region7: #{tpu_custom_call.1} parent=1 // loop_footer_branch
      %10 = sbr.rel target = $region3
    $region8: #{tpu_custom_call.1} parent=1 // loop_exit
      _

</llo_original>
